<compile_context>
chip_gen: v6e
topology: v6e:2x2x1
jax: 0.10.0
libtpu: 0.0.40
codegen_flags: <defaults>
</compile_context>

<pallas_src>
import jax
import jax.numpy as jnp
import numpy as np
from jax.experimental import pallas as pl
from jax.experimental.pallas import tpu as pltpu


def _classifier_kernel(obs_ref, ih_ref, out_ref):
    # obs_ref: (TB, N), ih_ref: (TB, M) in native float dtype; out_ref: (TB, 1) i32
    # Reduce in the native dtype (max is exact there), cast only the per-row
    # maxima to f32 for the tolerance compares.
    obs_h = jnp.max(obs_ref[...], axis=1, keepdims=True).astype(jnp.float32)  # (TB, 1)
    ih_h = jnp.max(ih_ref[...], axis=1, keepdims=True).astype(jnp.float32)    # (TB, 1)

    tol = jnp.float32(0.001)

    def eq(a, b):
        return jnp.abs(a - jnp.float32(b)) < tol

    # Hoist shared predicates once each.
    ih0 = eq(ih_h, 0.0)
    ih3 = eq(ih_h, 0.03)
    # if not (ih ~ 0 or ih ~ 0.03): ih := 0.03  ->  ih3 becomes true, ih0 stays false
    ih3 = ih3 | jnp.logical_not(ih0 | ih3)

    o3 = eq(obs_h, 0.03)
    o6 = eq(obs_h, 0.06)
    o9 = eq(obs_h, 0.09)
    o12 = eq(obs_h, 0.12)

    # Branches are mutually exclusive (0.001 tolerance << 0.03 spacing), so the
    # select order matches the first-match semantics of the reference.
    res = jnp.full(obs_h.shape, 6, dtype=jnp.int32)
    res = jnp.where(o12 & ih0, jnp.int32(0), res)
    res = jnp.where(o9 & ih3, jnp.int32(1), res)
    res = jnp.where(o9 & ih0, jnp.int32(2), res)
    res = jnp.where(o6 & ih3, jnp.int32(3), res)
    res = jnp.where(o6 & ih0, jnp.int32(4), res)
    res = jnp.where(o3 & ih3, jnp.int32(5), res)
    # (o3 & ih0) -> 6 is identical to the default; no select needed.

    out_ref[...] = res


_NATIVE_DTYPES = {np.dtype(jnp.float32), np.dtype(jnp.bfloat16), np.dtype(jnp.float16)}

# Tile VMEM budget for the double-buffered input tiles.  Sized conservatively
# for v7x (64 MiB physical / 32 MiB scoped default); generous on v5e/v6e.
_VMEM_TILE_BUDGET = 24 * 1024 * 1024
_VMEM_LIMIT_BYTES = 48 * 1024 * 1024
_TB_CAP = 1024


def _round_up(x, m):
    return ((x + m - 1) // m) * m


def block_stacking_perfect_classifier(obs, inhand):
    """obs: (B, C, H, W), inhand: (B, C, h, w) -> (B,) int32 class ids."""
    B = obs.shape[0]
    obs2d = obs.reshape(B, -1)
    ih2d = inhand.reshape(B, -1)
    # Keep native float dtype through the DMA (HBM-bound kernel); only cast
    # exotic dtypes to f32 in the wrapper.
    if obs2d.dtype not in _NATIVE_DTYPES:
        obs2d = obs2d.astype(jnp.float32)
    if ih2d.dtype not in _NATIVE_DTYPES:
        ih2d = ih2d.astype(jnp.float32)

    N = obs2d.shape[1]
    M = ih2d.shape[1]
    row_bytes = N * obs2d.dtype.itemsize + M * ih2d.dtype.itemsize

    # 2 pipeline buffers per input => ~2 * TB * row_bytes of VMEM for tiles.
    tb_budget = max(8, (_VMEM_TILE_BUDGET // (2 * row_bytes)) // 8 * 8)
    tb = min(tb_budget, _TB_CAP, _round_up(B, 8))

    # No wrapper-side padding: grid = cdiv, the last block may be ragged.
    # In-bounds rows are exact; out-of-bounds rows are never written back.
    grid = (pl.cdiv(B, tb),)
    # TODO(synk): if a single row (N or M) ever exceeds the VMEM tile budget,
    # add a second "arbitrary" grid axis with a running-max scratch.

    out = pl.pallas_call(
        _classifier_kernel,
        out_shape=jax.ShapeDtypeStruct((B, 1), jnp.int32),
        grid_spec=pltpu.PrefetchScalarGridSpec(
            num_scalar_prefetch=0,
            grid=grid,
            in_specs=[
                pl.BlockSpec((tb, N), lambda i: (i, 0)),
                pl.BlockSpec((tb, M), lambda i: (i, 0)),
            ],
            out_specs=pl.BlockSpec((tb, 1), lambda i: (i, 0)),
        ),
        compiler_params=pltpu.CompilerParams(
            dimension_semantics=("parallel",),
            vmem_limit_bytes=_VMEM_LIMIT_BYTES,
        ),
        cost_estimate=pl.CostEstimate(
            flops=B * (N + M),
            transcendentals=0,
            bytes_accessed=B * row_bytes + B * 4,
        ),
    )(obs2d, ih2d)
    return out.reshape(B)


def _reference(obs, inhand):
    obs = np.asarray(obs, dtype=np.float32)
    inhand = np.asarray(inhand, dtype=np.float32)
    res = []
    for i in range(obs.shape[0]):
        oh = float(obs[i].max())
        ih = float(inhand[i].max())
        eq = lambda a, b: abs(a - b) < 0.001
        if not (eq(ih, 0) or eq(ih, 0.03)):
            ih = 0.03
        if eq(oh, 0.03) and eq(ih, 0):
            res.append(6); continue
        if eq(oh, 0.03) and eq(ih, 0.03):
            res.append(5); continue
        if eq(oh, 0.06) and eq(ih, 0):
            res.append(4); continue
        if eq(oh, 0.06) and eq(ih, 0.03):
            res.append(3); continue
        if eq(oh, 0.09) and eq(ih, 0):
            res.append(2); continue
        if eq(oh, 0.09) and eq(ih, 0.03):
            res.append(1); continue
        if eq(oh, 0.12) and eq(ih, 0):
            res.append(0); continue
        res.append(6)
    return np.array(res, dtype=np.int32)


if __name__ == "__main__":
    key = jax.random.PRNGKey(0)
    # B=7 deliberately exercises the ragged (non multiple-of-8) last block.
    B, C, H, W = 7, 1, 16, 16
    hh, hw = 8, 8

    k_obs, k_ih = jax.random.split(key)
    # obs background noise < 0.02 so the planted peak is the max.
    obs = jax.random.uniform(k_obs, (B, C, H, W), jnp.float32, 0.0, 0.02)
    # inhand background noise < 0.001 so rows without a peak classify as "~0".
    inhand = jax.random.uniform(k_ih, (B, C, hh, hw), jnp.float32, 0.0, 0.0008)

    # Plant per-image peak heights covering every class 0..6; row 3's in-hand
    # height (0.07) is "invalid" and is forced to 0.03 by the classifier.
    obs_peaks = jnp.array([0.12, 0.09, 0.09, 0.06, 0.06, 0.03, 0.03], dtype=jnp.float32)
    ih_peaks = jnp.array([0.0, 0.03, 0.0, 0.07, 0.0, 0.03, 0.0], dtype=jnp.float32)

    obs = obs.at[:, 0, H // 2, W // 2].set(obs_peaks)
    inhand = inhand.at[:, 0, hh // 2, hw // 2].set(ih_peaks)

    out = block_stacking_perfect_classifier(obs, inhand)
    out = jax.block_until_ready(out)

    ref = _reference(obs, inhand)
    assert out.shape == (B,), out.shape
    assert out.dtype == jnp.int32, out.dtype
    assert np.array_equal(np.asarray(out), ref), (np.asarray(out), ref)
    print("KERNEL_OK")
</pallas_src>

<mosaic_0001>
module attributes {stable_mosaic.version = 11 : i64} {
  func.func @_classifier_kernel(%arg0: i32, %arg1: memref<8x256xf32, #tpu.memory_space<vmem>>, %arg2: memref<8x64xf32, #tpu.memory_space<vmem>>, %arg3: memref<8x1xi32, #tpu.memory_space<vmem>>) attributes {dimension_semantics = [#tpu.dimension_semantics<parallel>], iteration_bounds = array<i64: 1>, scalar_prefetch = 0 : i64, scratch_operands = 0 : i64, tpu.core_type = #tpu.core_type<tc>, window_params = [{transform_indices = @transform_0, window_bounds = array<i64: 8, 256>}, {transform_indices = @transform_1, window_bounds = array<i64: 8, 64>}, {transform_indices = @transform_2, window_bounds = array<i64: 8, 1>}]} {
    %c0 = arith.constant 0 : index
    %c0_0 = arith.constant 0 : index
    %0 = vector.load %arg1[%c0, %c0_0] : memref<8x256xf32, #tpu.memory_space<vmem>>, vector<8x256xf32>
    %cst = arith.constant dense<0xFF800000> : vector<8xf32>
    %1 = vector.multi_reduction <maximumf>, %0, %cst [1] : vector<8x256xf32> to vector<8xf32>
    %2 = vector.shape_cast %1 : vector<8xf32> to vector<8x1xf32>
    %c0_1 = arith.constant 0 : index
    %c0_2 = arith.constant 0 : index
    %3 = vector.load %arg2[%c0_1, %c0_2] : memref<8x64xf32, #tpu.memory_space<vmem>>, vector<8x64xf32>
    %cst_3 = arith.constant dense<0xFF800000> : vector<8xf32>
    %4 = vector.multi_reduction <maximumf>, %3, %cst_3 [1] : vector<8x64xf32> to vector<8xf32>
    %5 = vector.shape_cast %4 : vector<8xf32> to vector<8x1xf32>
    %cst_4 = arith.constant 0.000000e+00 : f32
    %6 = vector.broadcast %cst_4 : f32 to vector<8x1xf32>
    %7 = arith.subf %5, %6 : vector<8x1xf32>
    %8 = math.absf %7 : vector<8x1xf32>
    %cst_5 = arith.constant 1.000000e-03 : f32
    %9 = vector.broadcast %cst_5 : f32 to vector<8x1xf32>
    %10 = arith.cmpf olt, %8, %9 : vector<8x1xf32>
    %cst_6 = arith.constant 3.000000e-02 : f32
    %11 = vector.broadcast %cst_6 : f32 to vector<8x1xf32>
    %12 = arith.subf %5, %11 : vector<8x1xf32>
    %13 = math.absf %12 : vector<8x1xf32>
    %cst_7 = arith.constant 1.000000e-03 : f32
    %14 = vector.broadcast %cst_7 : f32 to vector<8x1xf32>
    %15 = arith.cmpf olt, %13, %14 : vector<8x1xf32>
    %16 = arith.ori %10, %15 : vector<8x1xi1>
    %cst_8 = arith.constant dense<true> : vector<8x1xi1>
    %17 = arith.xori %16, %cst_8 : vector<8x1xi1>
    %18 = arith.ori %15, %17 : vector<8x1xi1>
    %cst_9 = arith.constant 3.000000e-02 : f32
    %19 = vector.broadcast %cst_9 : f32 to vector<8x1xf32>
    %20 = arith.subf %2, %19 : vector<8x1xf32>
    %21 = math.absf %20 : vector<8x1xf32>
    %cst_10 = arith.constant 1.000000e-03 : f32
    %22 = vector.broadcast %cst_10 : f32 to vector<8x1xf32>
    %23 = arith.cmpf olt, %21, %22 : vector<8x1xf32>
    %cst_11 = arith.constant 6.000000e-02 : f32
    %24 = vector.broadcast %cst_11 : f32 to vector<8x1xf32>
    %25 = arith.subf %2, %24 : vector<8x1xf32>
    %26 = math.absf %25 : vector<8x1xf32>
    %cst_12 = arith.constant 1.000000e-03 : f32
    %27 = vector.broadcast %cst_12 : f32 to vector<8x1xf32>
    %28 = arith.cmpf olt, %26, %27 : vector<8x1xf32>
    %cst_13 = arith.constant 9.000000e-02 : f32
    %29 = vector.broadcast %cst_13 : f32 to vector<8x1xf32>
    %30 = arith.subf %2, %29 : vector<8x1xf32>
    %31 = math.absf %30 : vector<8x1xf32>
    %cst_14 = arith.constant 1.000000e-03 : f32
    %32 = vector.broadcast %cst_14 : f32 to vector<8x1xf32>
    %33 = arith.cmpf olt, %31, %32 : vector<8x1xf32>
    %cst_15 = arith.constant 1.200000e-01 : f32
    %34 = vector.broadcast %cst_15 : f32 to vector<8x1xf32>
    %35 = arith.subf %2, %34 : vector<8x1xf32>
    %36 = math.absf %35 : vector<8x1xf32>
    %cst_16 = arith.constant 1.000000e-03 : f32
    %37 = vector.broadcast %cst_16 : f32 to vector<8x1xf32>
    %38 = arith.cmpf olt, %36, %37 : vector<8x1xf32>
    %c6_i32 = arith.constant 6 : i32
    %39 = vector.broadcast %c6_i32 : i32 to vector<8x1xi32>
    %40 = arith.andi %38, %10 : vector<8x1xi1>
    %c0_i32 = arith.constant 0 : i32
    %41 = vector.broadcast %c0_i32 : i32 to vector<8x1xi32>
    %42 = arith.select %40, %41, %39 : vector<8x1xi1>, vector<8x1xi32>
    %43 = arith.andi %33, %18 : vector<8x1xi1>
    %c1_i32 = arith.constant 1 : i32
    %44 = vector.broadcast %c1_i32 : i32 to vector<8x1xi32>
    %45 = arith.select %43, %44, %42 : vector<8x1xi1>, vector<8x1xi32>
    %46 = arith.andi %33, %10 : vector<8x1xi1>
    %c2_i32 = arith.constant 2 : i32
    %47 = vector.broadcast %c2_i32 : i32 to vector<8x1xi32>
    %48 = arith.select %46, %47, %45 : vector<8x1xi1>, vector<8x1xi32>
    %49 = arith.andi %28, %18 : vector<8x1xi1>
    %c3_i32 = arith.constant 3 : i32
    %50 = vector.broadcast %c3_i32 : i32 to vector<8x1xi32>
    %51 = arith.select %49, %50, %48 : vector<8x1xi1>, vector<8x1xi32>
    %52 = arith.andi %28, %10 : vector<8x1xi1>
    %c4_i32 = arith.constant 4 : i32
    %53 = vector.broadcast %c4_i32 : i32 to vector<8x1xi32>
    %54 = arith.select %52, %53, %51 : vector<8x1xi1>, vector<8x1xi32>
    %55 = arith.andi %23, %18 : vector<8x1xi1>
    %c5_i32 = arith.constant 5 : i32
    %56 = vector.broadcast %c5_i32 : i32 to vector<8x1xi32>
    %57 = arith.select %55, %56, %54 : vector<8x1xi1>, vector<8x1xi32>
    %c0_17 = arith.constant 0 : index
    %c0_18 = arith.constant 0 : index
    %58 = vector.load %arg3[%c0_17, %c0_18] : memref<8x1xi32, #tpu.memory_space<vmem>>, vector<8x1xi32>
    tpu.vector_store %arg3[%c0_17, %c0_18], %57 {strides = array<i32>} : memref<8x1xi32, #tpu.memory_space<vmem>>, vector<8x1xi32>,
    return
  }
  func.func @transform_0(%arg0: i32) -> (i32, i32) {
    %c0_i32 = arith.constant 0 : i32
    %c0_i32_0 = arith.constant 0 : i32
    return %arg0, %c0_i32 : i32, i32
  }
  func.func @transform_1(%arg0: i32) -> (i32, i32) {
    %c0_i32 = arith.constant 0 : i32
    %c0_i32_0 = arith.constant 0 : i32
    return %arg0, %c0_i32 : i32, i32
  }
  func.func @transform_2(%arg0: i32) -> (i32, i32) {
    %c0_i32 = arith.constant 0 : i32
    %c0_i32_0 = arith.constant 0 : i32
    return %arg0, %c0_i32 : i32, i32
  }
}

</mosaic_0001>

<llo_original>
// kernel: tpu_custom_call.1
$region0: #{tpu_custom_call.1}
  #allocation0 [shape = 'u32[]', space=smem, size = 0x4, offset = 0x4, fixed_abs, tag = 'smem constant byte address 0x4 - core index']
  #allocation1 [shape = 'u32[144,128]{1,0:T(1,128)}', space=vmem, size = 0x12000, scoped, tag = 'internal scratch']
  %s0 = inlined_call_operand.hbm [shape: f32[7,256], index: 0, kind: input, shape index: {}]
  %s1 = inlined_call_operand.hbm [shape: f32[7,64], index: 1, kind: input, shape index: {}]
  %s2 = inlined_call_operand.vmem [shape: s32[7,1], index: 2, kind: output, shape index: {}]
  %s3 = sld [smem:[#allocation0]]
  $region26: #{tpu_custom_call.1} parent=0
    _
  %s5 = ssub.s32 1, %s3
  %s6 = scalar_select 0, %s5, %s3
  $region1: #{tpu_custom_call.1} parent=0
    #allocation2 [shape = 'u8[8192]{0}', space=vmem, size = 0x2000, scoped, tag = 'input window, operand 0, single buffered']
    #allocation3 [shape = 's32[1]{0}', space=sflag, size = 0x4, scoped, tag = 'scoped memory for tpu_custom_call.1']
    #allocation4 [shape = 'u8[4096]{0}', space=vmem, size = 0x1000, scoped, tag = 'input window, operand 1, single buffered']
    #allocation5 [shape = 's32[1]{0}', space=sflag, size = 0x4, scoped, tag = 'scoped memory for tpu_custom_call.1']
    %7 = vsyncpa [#allocation3], 0
    %8 = vsyncpa [#allocation5], 0
    // Predicated region
    $region2: #{tpu_custom_call.1} parent=1 // pred_check
      _
    $region3: #{tpu_custom_call.1} parent=1 // pred_check_branch
      %10 = sbr.rel (0) target = $region5
    $region4: #{tpu_custom_call.1} parent=1 // pred_region
      %s12 = ssub.s32 256, 256
      %13 = vsyncadd [#allocation3], %s12
      %s15 = sshll.u32 [#allocation2], 4
      %s16 = int_to_ptr.vmem [resolvable:$true] %s15
      %18 = dma.hbm_to_vmem [thread:$0]  %s0, 256, %s16, [#allocation3]
    $region5: #{tpu_custom_call.1} parent=1 // pred_fallthru
      _
    // Predicated region
    $region6: #{tpu_custom_call.1} parent=1 // pred_check
      _
    $region7: #{tpu_custom_call.1} parent=1 // pred_check_branch
      %20 = sbr.rel (0) target = $region9
    $region8: #{tpu_custom_call.1} parent=1 // pred_region
      %s22 = ssub.s32 128, 128
      %23 = vsyncadd [#allocation5], %s22
      %s25 = sshll.u32 [#allocation4], 4
      %s26 = int_to_ptr.vmem [resolvable:$true] %s25
      %28 = dma.hbm_to_vmem [thread:$0]  %s1, 128, %s26, [#allocation5]
    $region9: #{tpu_custom_call.1} parent=1 // pred_fallthru
      _
    // Predicated region
    $region10: #{tpu_custom_call.1} parent=1 // pred_check
      _
    $region11: #{tpu_custom_call.1} parent=1 // pred_check_branch
      %30 = sbr.rel (0) target = $region13
    $region12: #{tpu_custom_call.1} parent=1 // pred_region
      %31 = dma.done [#allocation3], 256
    $region13: #{tpu_custom_call.1} parent=1 // pred_fallthru
      _
    // Predicated region
    $region14: #{tpu_custom_call.1} parent=1 // pred_check
      _
    $region15: #{tpu_custom_call.1} parent=1 // pred_check_branch
      %33 = sbr.rel (0) target = $region17
    $region16: #{tpu_custom_call.1} parent=1 // pred_region
      %34 = dma.done [#allocation5], 128
    $region17: #{tpu_custom_call.1} parent=1 // pred_fallthru
      _
    %v35 = vld [vmem:[#allocation2] sm:$0xff]
    %v36 = vld [vmem:[#allocation2 + $0x8] sm:$0xff]
    %v37 = vmax.f32 %v35, %v36
    %38 = vmax.xlane.f32.xlu0 %v37
    %v39 = vpop.xlane.xlu0 %38
    %v40 = vld [vmem:[#allocation4] sm:$0xff]
    %vm41 = vcmask 523264
    %v42 = vsel %vm41, %v40, -inf
    %43 = vmax.xlane.f32.xlu0 %v42
    %v44 = vpop.xlane.xlu0 %43
    %v45 = vand.u32 2147483647, %v44
    %vm46 = vcmp.lt.f32.partialorder %v45, 0.001
    %v47 = vsub.f32 %v44, 0.03
    %v48 = vand.u32 2147483647, %v47
    %vm49 = vcmp.lt.f32.partialorder %v48, 0.001
    %vm50 = vmor %vm46, %vm49
    %vm51 = vmxor %vm50, 1
    %vm52 = vmor %vm49, %vm51
    %v53 = vsub.f32 %v39, 0.03
    %v54 = vand.u32 2147483647, %v53
    %vm55 = vcmp.lt.f32.partialorder %v54, 0.001
    %v56 = vsub.f32 %v39, 0.06
    %v57 = vand.u32 2147483647, %v56
    %vm58 = vcmp.lt.f32.partialorder %v57, 0.001
    %v59 = vsub.f32 %v39, 0.09
    %v60 = vand.u32 2147483647, %v59
    %vm61 = vcmp.lt.f32.partialorder %v60, 0.001
    %v62 = vsub.f32 %v39, 0.12
    %v63 = vand.u32 2147483647, %v62
    %vm64 = vcmp.lt.f32.partialorder %v63, 0.001
    %vm65 = vmand %vm64, %vm46
    %v66 = vsel %vm65, 0, 6
    %vm67 = vmand %vm61, %vm52
    %v68 = vsel %vm67, 1, %v66
    %vm69 = vmand %vm61, %vm46
    %v70 = vsel %vm69, 2, %v68
    %vm71 = vmand %vm58, %vm52
    %v72 = vsel %vm71, 3, %v70
    %vm73 = vmand %vm58, %vm46
    %v74 = vsel %vm73, 4, %v72
    %vm75 = vmand %vm55, %vm52
    %v76 = vsel %vm75, 5, %v74
    %vm77 = vcmask 7168
    %78 = vst.msk [vmem:[%s2] sm:$0xff] %vm77, %v76
    // Predicated region
    $region18: #{tpu_custom_call.1} parent=1 // pred_check
      _
    $region19: #{tpu_custom_call.1} parent=1 // pred_check_branch
      %80 = sbr.rel (0) target = $region21
    $region20: #{tpu_custom_call.1} parent=1 // pred_region
      _
    $region21: #{tpu_custom_call.1} parent=1 // pred_fallthru
      _
    // Predicated region
    $region22: #{tpu_custom_call.1} parent=1 // pred_check
      _
    $region23: #{tpu_custom_call.1} parent=1 // pred_check_branch
      %82 = sbr.rel (0) target = $region25
    $region24: #{tpu_custom_call.1} parent=1 // pred_region
      _
    $region25: #{tpu_custom_call.1} parent=1 // pred_fallthru
      _
    %83 = vsyncpa [#allocation3], 1
    %84 = vsyncpa [#allocation5], 1

</llo_original>
